<compile_context>
chip_gen: v7x
topology: tpu7x:2x2x1
jax: 0.10.0
libtpu: 0.0.40
codegen_flags: <defaults>
</compile_context>

<pallas_src>
import functools

import jax
import jax.numpy as jnp
from jax import lax
from jax.experimental import pallas as pl
from jax.experimental.pallas import tpu as pltpu

IN_FEATURES = 28 * 28          # 784
NUM_CLASSES = 10
LANE = 128


def _round_up(n, m):
    return (n + m - 1) // m * m


def _cdiv(a, b):
    return -(-a // b)


def _sigmoid(x):
    # single-transcendental sigmoid: one EUP tanh, VALU absorbs the mul/add
    return 0.5 * jnp.tanh(0.5 * x) + 0.5


def mnist_kernel(x_ref, w1_ref, b1_ref, w23_ref, b23_ref,
                 a_ref, fused_ref, *, num_classes):
    # ---- stage 1: hidden layer + sigmoid (bf16 MXU operands, f32 accumulate) ----
    x = x_ref[...].astype(jnp.bfloat16)                     # cast tile in-kernel
    h = jnp.dot(x, w1_ref[...], preferred_element_type=jnp.float32) + b1_ref[...]
    a = _sigmoid(h)                                          # f32 [TB, 128]
    a_bf = a.astype(jnp.bfloat16)
    a_ref[...] = a_bf                                        # lane-dense bf16 store

    # ---- stage 2: fused (output_layer | sm_layer) single 128-wide matmul ----
    z = jnp.dot(a_bf, w23_ref[...],
                preferred_element_type=jnp.float32) + b23_ref[...]   # [TB, F_W] f32

    lane = lax.broadcasted_iota(jnp.int32, z.shape, 1)
    is_cls = lane < num_classes

    # stable softmax restricted to the class lanes (exact reciprocal -> rows sum to 1)
    zc = jnp.where(is_cls, z, jnp.float32(-1e30))
    m = jnp.max(zc, axis=-1, keepdims=True)
    e = jnp.exp(zc - m)                                      # 0 on non-class lanes
    denom = jnp.sum(e, axis=-1, keepdims=True)
    probs = e * (1.0 / denom)                                # exact recip on [TB,1]

    # sigmoid on the sm-layer lanes (padded lanes give 0.5, discarded by wrapper)
    sig = _sigmoid(z)

    # single lane-dense store: class lanes = softmax, remaining lanes = sigmoid
    fused_ref[...] = jnp.where(is_cls, probs, sig)


def _choose_batch_tile(B, max_batch_tile):
    """Bound batch padding and keep >= 2 grid steps (v7x megacore) when B > 8."""
    steps = max(_cdiv(B, max_batch_tile), 2 if B > 8 else 1)
    tb = _round_up(_cdiv(B, steps), 8)
    return tb


def mnist_forward(x, params, *, max_batch_tile=2048):
    """x: [B, 1, 28, 28] float32 (NCHW). Returns (output, a_hat, a)."""
    w1, b1, w2, b2, w3, b3 = params      # weights stored [in, out], biases [1, out]
    B = x.shape[0]
    hidden = w1.shape[1]
    H_PAD = _round_up(hidden, LANE)                       # 128
    F_W = _round_up(NUM_CLASSES + hidden, LANE)           # 128 for hidden=64

    # ---- wrapper-side layout plumbing (rows-only padding, no x copy/cast) ----
    x_flat = x.reshape(B, -1).astype(jnp.float32)         # [B, 784], natural layout
    K = x_flat.shape[1]

    TB = _choose_batch_tile(B, max_batch_tile)
    B_pad = _round_up(B, TB)
    if B_pad != B:
        x_flat = jnp.pad(x_flat, ((0, B_pad - B), (0, 0)))

    # W1: no K padding (K=784 is the full array dim -> satisfies the (8,128) rule)
    w1p = jnp.zeros((K, H_PAD), jnp.float32).at[:, :hidden].set(w1)
    w1p = w1p.astype(jnp.bfloat16)
    b1p = jnp.zeros((1, H_PAD), jnp.float32).at[:, :hidden].set(b1)

    # fused second-stage weight: cols [0,10) = output_layer, [10,10+hidden) = sm_layer
    w23 = jnp.zeros((H_PAD, F_W), jnp.float32)
    w23 = w23.at[:hidden, :NUM_CLASSES].set(w2)
    w23 = w23.at[:hidden, NUM_CLASSES:NUM_CLASSES + hidden].set(w3)
    w23 = w23.astype(jnp.bfloat16)
    b23 = jnp.zeros((1, F_W), jnp.float32)
    b23 = b23.at[:, :NUM_CLASSES].set(b2)
    b23 = b23.at[:, NUM_CLASSES:NUM_CLASSES + hidden].set(b3)

    kernel = functools.partial(mnist_kernel, num_classes=NUM_CLASSES)

    a_full, fused_full = pl.pallas_call(
        kernel,
        out_shape=(
            jax.ShapeDtypeStruct((B_pad, H_PAD), jnp.bfloat16),  # a (padded, bf16)
            jax.ShapeDtypeStruct((B_pad, F_W), jnp.float32),     # [softmax | sigmoid]
        ),
        grid=(B_pad // TB,),
        in_specs=[
            pl.BlockSpec((TB, K), lambda i: (i, 0)),            # x tile (f32, natural K)
            pl.BlockSpec((K, H_PAD), lambda i: (0, 0)),         # W1  (VMEM resident)
            pl.BlockSpec((1, H_PAD), lambda i: (0, 0)),         # b1
            pl.BlockSpec((H_PAD, F_W), lambda i: (0, 0)),       # fused W23
            pl.BlockSpec((1, F_W), lambda i: (0, 0)),           # fused b23
        ],
        out_specs=(
            pl.BlockSpec((TB, H_PAD), lambda i: (i, 0)),
            pl.BlockSpec((TB, F_W), lambda i: (i, 0)),
        ),
        compiler_params=pltpu.CompilerParams(
            dimension_semantics=("parallel",),
            vmem_limit_bytes=64 * 1024 * 1024,
        ),
    )(x_flat, w1p, b1p, w23, b23)

    # slice padded / fused slabs back to the module's shapes
    output = fused_full[:B, :NUM_CLASSES]
    a_hat = fused_full[:B, NUM_CLASSES:NUM_CLASSES + hidden]
    a = a_full[:B, :hidden].astype(jnp.float32)
    return output, a_hat, a


def init_params(key, hidden_size=64):
    """Deterministic synthetic parameters (shapes match the torch module)."""
    k1, k2, k3, k4, k5, k6 = jax.random.split(key, 6)
    # Stored as [in, out] (transposed vs torch Linear weight [out, in]).
    w1 = jax.random.normal(k1, (IN_FEATURES, hidden_size), jnp.float32) * 0.05
    b1 = jax.random.normal(k2, (1, hidden_size), jnp.float32) * 0.05
    w2 = jax.random.normal(k3, (hidden_size, NUM_CLASSES), jnp.float32) * 0.05
    b2 = jax.random.normal(k4, (1, NUM_CLASSES), jnp.float32) * 0.05
    w3 = jax.random.normal(k5, (hidden_size, hidden_size), jnp.float32) * 0.05
    b3 = jax.random.normal(k6, (1, hidden_size), jnp.float32) * 0.05
    return (w1, b1, w2, b2, w3, b3)


def reference_forward(x, params):
    """Pure-JAX f32 reference for correctness check."""
    w1, b1, w2, b2, w3, b3 = params
    x_flat = x.reshape(x.shape[0], -1)
    a = jax.nn.sigmoid(x_flat @ w1 + b1)
    output = jax.nn.softmax(a @ w2 + b2, axis=1)
    a_hat = jax.nn.sigmoid(a @ w3 + b3)
    return output, a_hat, a


if __name__ == "__main__":
    key = jax.random.PRNGKey(0)
    kx, kp = jax.random.split(key)

    B, hidden = 8, 64
    x = jax.random.normal(kx, (B, 1, 28, 28), jnp.float32)   # NCHW, MNIST-shaped
    params = init_params(kp, hidden_size=hidden)

    fwd = jax.jit(mnist_forward)
    output, a_hat, a = fwd(x, params)
    jax.block_until_ready((output, a_hat, a))

    # sanity check against pure-JAX reference (bf16 MXU operands => relaxed tol)
    ref_out, ref_ahat, ref_a = reference_forward(x, params)
    assert output.shape == (B, NUM_CLASSES) and a_hat.shape == (B, hidden) and a.shape == (B, hidden)
    assert jnp.allclose(output, ref_out, atol=2e-2), float(jnp.max(jnp.abs(output - ref_out)))
    assert jnp.allclose(a_hat, ref_ahat, atol=2e-2), float(jnp.max(jnp.abs(a_hat - ref_ahat)))
    assert jnp.allclose(a, ref_a, atol=2e-2), float(jnp.max(jnp.abs(a - ref_a)))
    # exact reciprocal in the softmax denominator => rows sum to 1 to ~1e-6
    assert jnp.allclose(jnp.sum(output, axis=1), 1.0, atol=1e-3)

    print("KERNEL_OK")
</pallas_src>

<mosaic_0001>
module attributes {stable_mosaic.version = 11 : i64} {
  func.func @mnist_kernel(%arg0: i32, %arg1: memref<8x784xf32, #tpu.memory_space<vmem>>, %arg2: memref<784x128xbf16, #tpu.memory_space<vmem>>, %arg3: memref<1x128xf32, #tpu.memory_space<vmem>>, %arg4: memref<128x128xbf16, #tpu.memory_space<vmem>>, %arg5: memref<1x128xf32, #tpu.memory_space<vmem>>, %arg6: memref<8x128xbf16, #tpu.memory_space<vmem>>, %arg7: memref<8x128xf32, #tpu.memory_space<vmem>>) attributes {dimension_semantics = [#tpu.dimension_semantics<parallel>], iteration_bounds = array<i64: 1>, scalar_prefetch = 0 : i64, scratch_operands = 0 : i64, tpu.core_type = #tpu.core_type<tc>, window_params = [{transform_indices = @transform_0, window_bounds = array<i64: 8, 784>}, {pipeline_mode = #tpu.pipeline_mode<synchronous>, transform_indices = @transform_1, window_bounds = array<i64: 784, 128>}, {pipeline_mode = #tpu.pipeline_mode<synchronous>, transform_indices = @transform_2, window_bounds = array<i64: 1, 128>}, {pipeline_mode = #tpu.pipeline_mode<synchronous>, transform_indices = @transform_3, window_bounds = array<i64: 128, 128>}, {pipeline_mode = #tpu.pipeline_mode<synchronous>, transform_indices = @transform_4, window_bounds = array<i64: 1, 128>}, {transform_indices = @transform_5, window_bounds = array<i64: 8, 128>}, {transform_indices = @transform_6, window_bounds = array<i64: 8, 128>}]} {
    %c0 = arith.constant 0 : index
    %c0_0 = arith.constant 0 : index
    %0 = vector.load %arg1[%c0, %c0_0] : memref<8x784xf32, #tpu.memory_space<vmem>>, vector<8x784xf32>
    %1 = arith.truncf %0 : vector<8x784xf32> to vector<8x784xbf16>
    %c0_1 = arith.constant 0 : index
    %c0_2 = arith.constant 0 : index
    %2 = vector.load %arg2[%c0_1, %c0_2] : memref<784x128xbf16, #tpu.memory_space<vmem>>, vector<784x128xbf16>
    %cst = arith.constant dense<0.000000e+00> : vector<8x128xf32>
    %3 = tpu.matmul %1, %2, %cst {dimension_numbers = #tpu.dot_dimension_numbers<[1], [0], [0], [1], [0, 0, 1, 1], [], []>} : vector<8x784xbf16>, vector<784x128xbf16>, vector<8x128xf32> -> vector<8x128xf32>
    %c0_3 = arith.constant 0 : index
    %c0_4 = arith.constant 0 : index
    %4 = vector.load %arg3[%c0_3, %c0_4] : memref<1x128xf32, #tpu.memory_space<vmem>>, vector<1x128xf32>
    %5 = vector.broadcast %4 : vector<1x128xf32> to vector<8x128xf32>
    %6 = arith.addf %3, %5 : vector<8x128xf32>
    %cst_5 = arith.constant 5.000000e-01 : f32
    %7 = vector.broadcast %cst_5 : f32 to vector<8x128xf32>
    %8 = arith.mulf %7, %6 : vector<8x128xf32>
    %9 = math.tanh %8 : vector<8x128xf32>
    %cst_6 = arith.constant 5.000000e-01 : f32
    %10 = vector.broadcast %cst_6 : f32 to vector<8x128xf32>
    %11 = arith.mulf %10, %9 : vector<8x128xf32>
    %cst_7 = arith.constant 5.000000e-01 : f32
    %12 = vector.broadcast %cst_7 : f32 to vector<8x128xf32>
    %13 = arith.addf %11, %12 : vector<8x128xf32>
    %14 = arith.truncf %13 : vector<8x128xf32> to vector<8x128xbf16>
    %c0_8 = arith.constant 0 : index
    %c0_9 = arith.constant 0 : index
    %15 = vector.load %arg6[%c0_8, %c0_9] : memref<8x128xbf16, #tpu.memory_space<vmem>>, vector<8x128xbf16>
    tpu.vector_store %arg6[%c0_8, %c0_9], %14 {strides = array<i32>} : memref<8x128xbf16, #tpu.memory_space<vmem>>, vector<8x128xbf16>,
    %c0_10 = arith.constant 0 : index
    %c0_11 = arith.constant 0 : index
    %16 = vector.load %arg4[%c0_10, %c0_11] : memref<128x128xbf16, #tpu.memory_space<vmem>>, vector<128x128xbf16>
    %cst_12 = arith.constant dense<0.000000e+00> : vector<8x128xf32>
    %17 = tpu.matmul %14, %16, %cst_12 {dimension_numbers = #tpu.dot_dimension_numbers<[1], [0], [0], [1], [0, 0, 1, 1], [], []>} : vector<8x128xbf16>, vector<128x128xbf16>, vector<8x128xf32> -> vector<8x128xf32>
    %c0_13 = arith.constant 0 : index
    %c0_14 = arith.constant 0 : index
    %18 = vector.load %arg5[%c0_13, %c0_14] : memref<1x128xf32, #tpu.memory_space<vmem>>, vector<1x128xf32>
    %19 = vector.broadcast %18 : vector<1x128xf32> to vector<8x128xf32>
    %20 = arith.addf %17, %19 : vector<8x128xf32>
    %21 = tpu.iota {dimensions = array<i32: 1>} : vector<8x128xi32>
    %c10_i32 = arith.constant 10 : i32
    %22 = vector.broadcast %c10_i32 : i32 to vector<8x128xi32>
    %23 = arith.cmpi slt, %21, %22 : vector<8x128xi32>
    %cst_15 = arith.constant -1.000000e+30 : f32
    %24 = vector.broadcast %cst_15 : f32 to vector<8x128xf32>
    %25 = arith.select %23, %20, %24 : vector<8x128xi1>, vector<8x128xf32>
    %cst_16 = arith.constant dense<0xFF800000> : vector<8xf32>
    %26 = vector.multi_reduction <maximumf>, %25, %cst_16 [1] : vector<8x128xf32> to vector<8xf32>
    %27 = vector.shape_cast %26 : vector<8xf32> to vector<8x1xf32>
    %28 = vector.broadcast %27 : vector<8x1xf32> to vector<8x128xf32>
    %29 = arith.subf %25, %28 : vector<8x128xf32>
    %30 = math.exp %29 : vector<8x128xf32>
    %cst_17 = arith.constant dense<0.000000e+00> : vector<8xf32>
    %31 = vector.multi_reduction <add>, %30, %cst_17 [1] : vector<8x128xf32> to vector<8xf32>
    %32 = vector.shape_cast %31 : vector<8xf32> to vector<8x1xf32>
    %cst_18 = arith.constant 1.000000e+00 : f32
    %33 = vector.broadcast %cst_18 : f32 to vector<8x1xf32>
    %34 = arith.divf %33, %32 : vector<8x1xf32>
    %35 = vector.broadcast %34 : vector<8x1xf32> to vector<8x128xf32>
    %36 = arith.mulf %30, %35 : vector<8x128xf32>
    %cst_19 = arith.constant 5.000000e-01 : f32
    %37 = vector.broadcast %cst_19 : f32 to vector<8x128xf32>
    %38 = arith.mulf %37, %20 : vector<8x128xf32>
    %39 = math.tanh %38 : vector<8x128xf32>
    %cst_20 = arith.constant 5.000000e-01 : f32
    %40 = vector.broadcast %cst_20 : f32 to vector<8x128xf32>
    %41 = arith.mulf %40, %39 : vector<8x128xf32>
    %cst_21 = arith.constant 5.000000e-01 : f32
    %42 = vector.broadcast %cst_21 : f32 to vector<8x128xf32>
    %43 = arith.addf %41, %42 : vector<8x128xf32>
    %44 = arith.select %23, %36, %43 : vector<8x128xi1>, vector<8x128xf32>
    %c0_22 = arith.constant 0 : index
    %c0_23 = arith.constant 0 : index
    %45 = vector.load %arg7[%c0_22, %c0_23] : memref<8x128xf32, #tpu.memory_space<vmem>>, vector<8x128xf32>
    tpu.vector_store %arg7[%c0_22, %c0_23], %44 {strides = array<i32>} : memref<8x128xf32, #tpu.memory_space<vmem>>, vector<8x128xf32>,
    return
  }
  func.func @transform_0(%arg0: i32) -> (i32, i32) {
    %c0_i32 = arith.constant 0 : i32
    %c0_i32_0 = arith.constant 0 : i32
    return %arg0, %c0_i32 : i32, i32
  }
  func.func @transform_1(%arg0: i32) -> (i32, i32) {
    %c0_i32 = arith.constant 0 : i32
    %c0_i32_0 = arith.constant 0 : i32
    %c0_i32_1 = arith.constant 0 : i32
    return %c0_i32, %c0_i32_0 : i32, i32
  }
  func.func @transform_2(%arg0: i32) -> (i32, i32) {
    %c0_i32 = arith.constant 0 : i32
    %c0_i32_0 = arith.constant 0 : i32
    %c0_i32_1 = arith.constant 0 : i32
    return %c0_i32, %c0_i32_0 : i32, i32
  }
  func.func @transform_3(%arg0: i32) -> (i32, i32) {
    %c0_i32 = arith.constant 0 : i32
    %c0_i32_0 = arith.constant 0 : i32
    %c0_i32_1 = arith.constant 0 : i32
    return %c0_i32, %c0_i32_0 : i32, i32
  }
  func.func @transform_4(%arg0: i32) -> (i32, i32) {
    %c0_i32 = arith.constant 0 : i32
    %c0_i32_0 = arith.constant 0 : i32
    %c0_i32_1 = arith.constant 0 : i32
    return %c0_i32, %c0_i32_0 : i32, i32
  }
  func.func @transform_5(%arg0: i32) -> (i32, i32) {
    %c0_i32 = arith.constant 0 : i32
    %c0_i32_0 = arith.constant 0 : i32
    return %arg0, %c0_i32 : i32, i32
  }
  func.func @transform_6(%arg0: i32) -> (i32, i32) {
    %c0_i32 = arith.constant 0 : i32
    %c0_i32_0 = arith.constant 0 : i32
    return %arg0, %c0_i32 : i32, i32
  }
}

</mosaic_0001>

<llo_original>
// kernel: mnist_forward.1
$region0: #{mnist_forward.1}
  #allocation0 [shape = 'u32[]', space=smem, size = 0x4, offset = 0x4, fixed_abs, tag = 'smem constant byte address 0x4 - core index']
  #allocation1 [shape = 'u32[144,128]{1,0:T(1,128)}', space=vmem, size = 0x12000, scoped, tag = 'internal scratch']
  %s0 = inlined_call_operand.hbm [shape: f32[8,784], index: 0, kind: input, shape index: {}]
  %s1 = inlined_call_operand.hbm [shape: bf16[784,128], index: 1, kind: input, shape index: {}]
  %s2 = inlined_call_operand.hbm [shape: f32[1,128], index: 2, kind: input, shape index: {}]
  %s3 = inlined_call_operand.hbm [shape: bf16[128,128], index: 3, kind: input, shape index: {}]
  %s4 = inlined_call_operand.hbm [shape: f32[1,128], index: 4, kind: input, shape index: {}]
  %s5 = inlined_call_operand.hbm [shape: bf16[8,128], index: 5, kind: output, shape index: {0}]
  %s6 = inlined_call_operand.hbm [shape: f32[8,128], index: 6, kind: output, shape index: {1}]
  %7 = xla_tuple %s5, %s6
  %s8 = sld [smem:[#allocation0]]
  $region58: #{mnist_forward.1} parent=0
    _
  %s10 = ssub.s32 1, %s8
  %s11 = scalar_select 0, %s10, %s8
  $region1: #{mnist_forward.1} parent=0
    #allocation2 [shape = 'u8[28672]{0}', space=vmem, size = 0x7000, scoped, tag = 'input window, operand 0, single buffered']
    #allocation3 [shape = 's32[1]{0}', space=sflag, size = 0x4, scoped, tag = 'scoped memory for mnist_forward.1']
    #allocation4 [shape = 's32[1]{0}', space=sflag, size = 0x4, scoped, tag = 'scoped memory for mnist_forward.1']
    #allocation5 [shape = 'u8[200704]{0}', space=vmem, size = 0x31000, scoped, tag = 'input window, operand 1, single buffered']
    #allocation6 [shape = 's32[1]{0}', space=sflag, size = 0x4, scoped, tag = 'scoped memory for mnist_forward.1']
    #allocation7 [shape = 'u8[512]{0}', space=vmem, size = 0x400, scoped, tag = 'input window, operand 2, single buffered']
    #allocation8 [shape = 'u8[32768]{0}', space=vmem, size = 0x8000, scoped, tag = 'input window, operand 3, single buffered']
    #allocation9 [shape = 's32[1]{0}', space=sflag, size = 0x4, scoped, tag = 'scoped memory for mnist_forward.1']
    #allocation10 [shape = 'u8[512]{0}', space=vmem, size = 0x400, scoped, tag = 'input window, operand 4, single buffered']
    #allocation11 [shape = 'u8[2048]{0}', space=vmem, size = 0x800, scoped, tag = 'output window, operand 0, single buffered']
    #allocation12 [shape = 'u8[4096]{0}', space=vmem, size = 0x1000, scoped, tag = 'output window, operand 1, single buffered']
    #allocation13 [shape = 's32[1]{0}', space=sflag, size = 0x4, scoped, tag = 'scoped memory for mnist_forward.1']
    %12 = vsyncpa [#allocation3], 0
    %13 = vsyncpa [#allocation6], 0
    %14 = vsyncpa [#allocation9], 0
    %15 = vsyncpa [#allocation4], 0
    %16 = vsyncpa [#allocation13], 0
    // Predicated region
    $region2: #{mnist_forward.1} parent=1 // pred_check
      _
    $region3: #{mnist_forward.1} parent=1 // pred_check_branch
      %18 = sbr.rel (0) target = $region5
    $region4: #{mnist_forward.1} parent=1 // pred_region
      %s20 = ssub.s32 896, 896
      %21 = vsyncadd [#allocation3], %s20
      %s23 = sshll.u32 [#allocation2], 4
      %s24 = int_to_ptr.vmem [resolvable:$true] %s23
      %26 = dma.hbm_to_vmem [thread:$0]  %s0, 896, %s24, [#allocation3]
    $region5: #{mnist_forward.1} parent=1 // pred_fallthru
      _
    // Predicated region
    $region6: #{mnist_forward.1} parent=1 // pred_check
      _
    $region7: #{mnist_forward.1} parent=1 // pred_check_branch
      %28 = sbr.rel (0) target = $region9
    $region8: #{mnist_forward.1} parent=1 // pred_region
      %s30 = ssub.s32 6272, 6272
      %31 = vsyncadd [#allocation6], %s30
      %s32 = sshll.u32 [#allocation5], 4
      %s33 = int_to_ptr.vmem [resolvable:$true] %s32
      %38 = dma.hbm_to_vmem [thread:$0]  %s1, 6272, %s33, [#allocation6], 64, 64, 4
    $region9: #{mnist_forward.1} parent=1 // pred_fallthru
      _
    // Predicated region
    $region10: #{mnist_forward.1} parent=1 // pred_check
      _
    $region11: #{mnist_forward.1} parent=1 // pred_check_branch
      %40 = sbr.rel (0) target = $region13
    $region12: #{mnist_forward.1} parent=1 // pred_region
      %s42 = ssub.s32 16, 16
      %43 = vsyncadd [#allocation6], %s42
      %s45 = sshll.u32 [#allocation7], 4
      %s46 = int_to_ptr.vmem [resolvable:$true] %s45
      %48 = dma.hbm_to_vmem [thread:$0]  %s2, 16, %s46, [#allocation6]
    $region13: #{mnist_forward.1} parent=1 // pred_fallthru
      _
    // Predicated region
    $region14: #{mnist_forward.1} parent=1 // pred_check
      _
    $region15: #{mnist_forward.1} parent=1 // pred_check_branch
      %50 = sbr.rel (0) target = $region17
    $region16: #{mnist_forward.1} parent=1 // pred_region
      %s52 = ssub.s32 1024, 1024
      %53 = vsyncadd [#allocation9], %s52
      %s54 = sshll.u32 [#allocation8], 4
      %s55 = int_to_ptr.vmem [resolvable:$true] %s54
      %60 = dma.hbm_to_vmem [thread:$0]  %s3, 1024, %s55, [#allocation9], 64, 64, 4
    $region17: #{mnist_forward.1} parent=1 // pred_fallthru
      _
    // Predicated region
    $region18: #{mnist_forward.1} parent=1 // pred_check
      _
    $region19: #{mnist_forward.1} parent=1 // pred_check_branch
      %62 = sbr.rel (0) target = $region21
    $region20: #{mnist_forward.1} parent=1 // pred_region
      %s64 = ssub.s32 16, 16
      %65 = vsyncadd [#allocation9], %s64
      %s67 = sshll.u32 [#allocation10], 4
      %s68 = int_to_ptr.vmem [resolvable:$true] %s67
      %70 = dma.hbm_to_vmem [thread:$0]  %s4, 16, %s68, [#allocation9]
    $region21: #{mnist_forward.1} parent=1 // pred_fallthru
      _
    // Predicated region
    $region22: #{mnist_forward.1} parent=1 // pred_check
      _
    $region23: #{mnist_forward.1} parent=1 // pred_check_branch
      %72 = sbr.rel (0) target = $region25
    $region24: #{mnist_forward.1} parent=1 // pred_region
      %73 = dma.done [#allocation3], 896
    $region25: #{mnist_forward.1} parent=1 // pred_fallthru
      _
    // Predicated region
    $region26: #{mnist_forward.1} parent=1 // pred_check
      _
    $region27: #{mnist_forward.1} parent=1 // pred_check_branch
      %75 = sbr.rel (0) target = $region29
    $region28: #{mnist_forward.1} parent=1 // pred_region
      %76 = dma.done [#allocation6], 6272
    $region29: #{mnist_forward.1} parent=1 // pred_fallthru
      _
    // Predicated region
    $region30: #{mnist_forward.1} parent=1 // pred_check
      _
    $region31: #{mnist_forward.1} parent=1 // pred_check_branch
      %78 = sbr.rel (0) target = $region33
    $region32: #{mnist_forward.1} parent=1 // pred_region
      %79 = dma.done [#allocation6], 16
    $region33: #{mnist_forward.1} parent=1 // pred_fallthru
      _
    // Predicated region
    $region34: #{mnist_forward.1} parent=1 // pred_check
      _
    $region35: #{mnist_forward.1} parent=1 // pred_check_branch
      %81 = sbr.rel (0) target = $region37
    $region36: #{mnist_forward.1} parent=1 // pred_region
      %82 = dma.done [#allocation9], 1024
    $region37: #{mnist_forward.1} parent=1 // pred_fallthru
      _
    // Predicated region
    $region38: #{mnist_forward.1} parent=1 // pred_check
      _
    $region39: #{mnist_forward.1} parent=1 // pred_check_branch
      %84 = sbr.rel (0) target = $region41
    $region40: #{mnist_forward.1} parent=1 // pred_region
      %85 = dma.done [#allocation9], 16
    $region41: #{mnist_forward.1} parent=1 // pred_fallthru
      _
    %v87 = vld [vmem:[#allocation2] sm:$0xff]
    %v88 = vld [vmem:[#allocation2 + $0x8] sm:$0xff]
    %v89 = vld [vmem:[#allocation2 + $0x10] sm:$0xff]
    %v90 = vld [vmem:[#allocation2 + $0x18] sm:$0xff]
    %v91 = vld [vmem:[#allocation2 + $0x20] sm:$0xff]
    %v92 = vld [vmem:[#allocation2 + $0x28] sm:$0xff]
    %v93 = vld [vmem:[#allocation2 + $0x30] sm:$0xff]
    %v94 = vpack.c.bf16 %v87, %v87
    %v95 = vpack.c.bf16 %v88, %v88
    %v96 = vpack.c.bf16 %v89, %v89
    %v97 = vpack.c.bf16 %v90, %v90
    %v98 = vpack.c.bf16 %v91, %v91
    %v99 = vpack.c.bf16 %v92, %v92
    %v100 = vpack.c.bf16 %v93, %v93
    %v101 = vld [vmem:[#allocation5] sm:$0xf]
    %v102 = vld [vmem:[#allocation5 + $0x4] sm:$0xf]
    %v103 = vld [vmem:[#allocation5 + $0x8] sm:$0xf]
    %v104 = vld [vmem:[#allocation5 + $0xc] sm:$0xf]
    %v105 = vld [vmem:[#allocation5 + $0x10] sm:$0xf]
    %v106 = vld [vmem:[#allocation5 + $0x14] sm:$0xf]
    %v107 = vld [vmem:[#allocation5 + $0x18] sm:$0xf]
    %v108 = vld [vmem:[#allocation5 + $0x1c] sm:$0xf]
    %v109 = vld [vmem:[#allocation5 + $0x20] sm:$0xf]
    %v110 = vld [vmem:[#allocation5 + $0x24] sm:$0xf]
    %v111 = vld [vmem:[#allocation5 + $0x28] sm:$0xf]
    %v112 = vld [vmem:[#allocation5 + $0x2c] sm:$0xf]
    %v113 = vld [vmem:[#allocation5 + $0x30] sm:$0xf]
    %v114 = vld [vmem:[#allocation5 + $0x34] sm:$0xf]
    %v115 = vld [vmem:[#allocation5 + $0x38] sm:$0xf]
    %v116 = vld [vmem:[#allocation5 + $0x3c] sm:$0xf]
    %v117 = vld [vmem:[#allocation5 + $0x40] sm:$0xf]
    %v118 = vld [vmem:[#allocation5 + $0x44] sm:$0xf]
    %v119 = vld [vmem:[#allocation5 + $0x48] sm:$0xf]
    %v120 = vld [vmem:[#allocation5 + $0x4c] sm:$0xf]
    %v121 = vld [vmem:[#allocation5 + $0x50] sm:$0xf]
    %v122 = vld [vmem:[#allocation5 + $0x54] sm:$0xf]
    %v123 = vld [vmem:[#allocation5 + $0x58] sm:$0xf]
    %v124 = vld [vmem:[#allocation5 + $0x5c] sm:$0xf]
    %v125 = vld [vmem:[#allocation5 + $0x60] sm:$0xf]
    %v126 = vld [vmem:[#allocation5 + $0x64] sm:$0xf]
    %v127 = vld [vmem:[#allocation5 + $0x68] sm:$0xf]
    %v128 = vld [vmem:[#allocation5 + $0x6c] sm:$0xf]
    %v129 = vld [vmem:[#allocation5 + $0x70] sm:$0xf]
    %v130 = vld [vmem:[#allocation5 + $0x74] sm:$0xf]
    %v131 = vld [vmem:[#allocation5 + $0x78] sm:$0xf]
    %v132 = vld [vmem:[#allocation5 + $0x7c] sm:$0xf]
    %v133 = vld [vmem:[#allocation5 + $0x80] sm:$0xf]
    %v134 = vld [vmem:[#allocation5 + $0x84] sm:$0xf]
    %v135 = vld [vmem:[#allocation5 + $0x88] sm:$0xf]
    %v136 = vld [vmem:[#allocation5 + $0x8c] sm:$0xf]
    %v137 = vld [vmem:[#allocation5 + $0x90] sm:$0xf]
    %v138 = vld [vmem:[#allocation5 + $0x94] sm:$0xf]
    %v139 = vld [vmem:[#allocation5 + $0x98] sm:$0xf]
    %v140 = vld [vmem:[#allocation5 + $0x9c] sm:$0xf]
    %v141 = vld [vmem:[#allocation5 + $0xa0] sm:$0xf]
    %v142 = vld [vmem:[#allocation5 + $0xa4] sm:$0xf]
    %v143 = vld [vmem:[#allocation5 + $0xa8] sm:$0xf]
    %v144 = vld [vmem:[#allocation5 + $0xac] sm:$0xf]
    %v145 = vld [vmem:[#allocation5 + $0xb0] sm:$0xf]
    %v146 = vld [vmem:[#allocation5 + $0xb4] sm:$0xf]
    %v147 = vld [vmem:[#allocation5 + $0xb8] sm:$0xf]
    %v148 = vld [vmem:[#allocation5 + $0xbc] sm:$0xf]
    %v149 = vld [vmem:[#allocation5 + $0xc0] sm:$0xf]
    %v150 = vld [vmem:[#allocation5 + $0xc4] sm:$0xf]
    %v151 = vld [vmem:[#allocation5 + $0xc8] sm:$0xf]
    %v152 = vld [vmem:[#allocation5 + $0xcc] sm:$0xf]
    %v153 = vld [vmem:[#allocation5 + $0xd0] sm:$0xf]
    %v154 = vld [vmem:[#allocation5 + $0xd4] sm:$0xf]
    %v155 = vld [vmem:[#allocation5 + $0xd8] sm:$0xf]
    %v156 = vld [vmem:[#allocation5 + $0xdc] sm:$0xf]
    %v157 = vld [vmem:[#allocation5 + $0xe0] sm:$0xf]
    %v158 = vld [vmem:[#allocation5 + $0xe4] sm:$0xf]
    %v159 = vld [vmem:[#allocation5 + $0xe8] sm:$0xf]
    %v160 = vld [vmem:[#allocation5 + $0xec] sm:$0xf]
    %v161 = vld [vmem:[#allocation5 + $0xf0] sm:$0xf]
    %v162 = vld [vmem:[#allocation5 + $0xf4] sm:$0xf]
    %v163 = vld [vmem:[#allocation5 + $0xf8] sm:$0xf]
    %v164 = vld [vmem:[#allocation5 + $0xfc] sm:$0xf]
    %v165 = vld [vmem:[#allocation5 + $0x100] sm:$0xf]
    %v166 = vld [vmem:[#allocation5 + $0x104] sm:$0xf]
    %v167 = vld [vmem:[#allocation5 + $0x108] sm:$0xf]
    %v168 = vld [vmem:[#allocation5 + $0x10c] sm:$0xf]
    %v169 = vld [vmem:[#allocation5 + $0x110] sm:$0xf]
    %v170 = vld [vmem:[#allocation5 + $0x114] sm:$0xf]
    %v171 = vld [vmem:[#allocation5 + $0x118] sm:$0xf]
    %v172 = vld [vmem:[#allocation5 + $0x11c] sm:$0xf]
    %v173 = vld [vmem:[#allocation5 + $0x120] sm:$0xf]
    %v174 = vld [vmem:[#allocation5 + $0x124] sm:$0xf]
    %v175 = vld [vmem:[#allocation5 + $0x128] sm:$0xf]
    %v176 = vld [vmem:[#allocation5 + $0x12c] sm:$0xf]
    %v177 = vld [vmem:[#allocation5 + $0x130] sm:$0xf]
    %v178 = vld [vmem:[#allocation5 + $0x134] sm:$0xf]
    %v179 = vld [vmem:[#allocation5 + $0x138] sm:$0xf]
    %v180 = vld [vmem:[#allocation5 + $0x13c] sm:$0xf]
    %v181 = vld [vmem:[#allocation5 + $0x140] sm:$0xf]
    %v182 = vld [vmem:[#allocation5 + $0x144] sm:$0xf]
    %v183 = vld [vmem:[#allocation5 + $0x148] sm:$0xf]
    %v184 = vld [vmem:[#allocation5 + $0x14c] sm:$0xf]
    %v185 = vld [vmem:[#allocation5 + $0x150] sm:$0xf]
    %v186 = vld [vmem:[#allocation5 + $0x154] sm:$0xf]
    %v187 = vld [vmem:[#allocation5 + $0x158] sm:$0xf]
    %v188 = vld [vmem:[#allocation5 + $0x15c] sm:$0xf]
    %v189 = vld [vmem:[#allocation5 + $0x160] sm:$0xf]
    %v190 = vld [vmem:[#allocation5 + $0x164] sm:$0xf]
    %v191 = vld [vmem:[#allocation5 + $0x168] sm:$0xf]
    %v192 = vld [vmem:[#allocation5 + $0x16c] sm:$0xf]
    %v193 = vld [vmem:[#allocation5 + $0x170] sm:$0xf]
    %v194 = vld [vmem:[#allocation5 + $0x174] sm:$0xf]
    %v195 = vld [vmem:[#allocation5 + $0x178] sm:$0xf]
    %v196 = vld [vmem:[#allocation5 + $0x17c] sm:$0xf]
    %v197 = vld [vmem:[#allocation5 + $0x180] sm:$0xf]
    %v198 = vld [vmem:[#allocation5 + $0x184] sm:$0xf]
    %v199 = vld [vmem:[#allocation7] sm:$0x1]
    %v201 = vlaneseq
    %v202 = vshrl.u32 %v201, 7
    %v203 = vsub.s32 0, %v202
    %v204 = vrot.slane %v199, %v203
    %v304 = vunpack.c.l.b16 %v101
    %v305 = vunpack.c.l.b16 %v102
    %v306 = vunpack.c.l.b16 %v103
    %v307 = vunpack.c.l.b16 %v104
    %v308 = vunpack.c.l.b16 %v105
    %v309 = vunpack.c.l.b16 %v106
    %v310 = vunpack.c.l.b16 %v107
    %v311 = vunpack.c.l.b16 %v108
    %v312 = vunpack.c.l.b16 %v109
    %v313 = vunpack.c.l.b16 %v110
    %v314 = vunpack.c.l.b16 %v111
    %v315 = vunpack.c.l.b16 %v112
    %v316 = vunpack.c.l.b16 %v113
    %v317 = vunpack.c.l.b16 %v114
    %v318 = vunpack.c.l.b16 %v115
    %v319 = vunpack.c.l.b16 %v116
    %v320 = vunpack.c.l.b16 %v117
    %v321 = vunpack.c.l.b16 %v118
    %v322 = vunpack.c.l.b16 %v119
    %v323 = vunpack.c.l.b16 %v120
    %v324 = vunpack.c.l.b16 %v121
    %v325 = vunpack.c.l.b16 %v122
    %v326 = vunpack.c.l.b16 %v123
    %v327 = vunpack.c.l.b16 %v124
    %v328 = vunpack.c.l.b16 %v125
    %v329 = vunpack.c.l.b16 %v126
    %v330 = vunpack.c.l.b16 %v127
    %v331 = vunpack.c.l.b16 %v128
    %v332 = vunpack.c.l.b16 %v129
    %v333 = vunpack.c.l.b16 %v130
    %v334 = vunpack.c.l.b16 %v131
    %v335 = vunpack.c.l.b16 %v132
    %v336 = vunpack.c.l.b16 %v133
    %v337 = vunpack.c.l.b16 %v134
    %v338 = vunpack.c.l.b16 %v135
    %v339 = vunpack.c.l.b16 %v136
    %v340 = vunpack.c.l.b16 %v137
    %v341 = vunpack.c.l.b16 %v138
    %v342 = vunpack.c.l.b16 %v139
    %v343 = vunpack.c.l.b16 %v140
    %v344 = vunpack.c.l.b16 %v141
    %v345 = vunpack.c.l.b16 %v142
    %v346 = vunpack.c.l.b16 %v143
    %v347 = vunpack.c.l.b16 %v144
    %v348 = vunpack.c.l.b16 %v145
    %v349 = vunpack.c.l.b16 %v146
    %v350 = vunpack.c.l.b16 %v147
    %v351 = vunpack.c.l.b16 %v148
    %v352 = vunpack.c.l.b16 %v149
    %v353 = vunpack.c.l.b16 %v150
    %v354 = vunpack.c.l.b16 %v151
    %v355 = vunpack.c.l.b16 %v152
    %v356 = vunpack.c.l.b16 %v153
    %v357 = vunpack.c.l.b16 %v154
    %v358 = vunpack.c.l.b16 %v155
    %v359 = vunpack.c.l.b16 %v156
    %v360 = vunpack.c.l.b16 %v157
    %v361 = vunpack.c.l.b16 %v158
    %v362 = vunpack.c.l.b16 %v159
    %v363 = vunpack.c.l.b16 %v160
    %v364 = vunpack.c.l.b16 %v161
    %v365 = vunpack.c.l.b16 %v162
    %v366 = vunpack.c.l.b16 %v163
    %v367 = vunpack.c.l.b16 %v164
    %v368 = vunpack.c.l.b16 %v165
    %v369 = vunpack.c.l.b16 %v166
    %v370 = vunpack.c.l.b16 %v167
    %v371 = vunpack.c.l.b16 %v168
    %v372 = vunpack.c.l.b16 %v169
    %v373 = vunpack.c.l.b16 %v170
    %v374 = vunpack.c.l.b16 %v171
    %v375 = vunpack.c.l.b16 %v172
    %v376 = vunpack.c.l.b16 %v173
    %v377 = vunpack.c.l.b16 %v174
    %v378 = vunpack.c.l.b16 %v175
    %v379 = vunpack.c.l.b16 %v176
    %v380 = vunpack.c.l.b16 %v177
    %v381 = vunpack.c.l.b16 %v178
    %v382 = vunpack.c.l.b16 %v179
    %v383 = vunpack.c.l.b16 %v180
    %v384 = vunpack.c.l.b16 %v181
    %v385 = vunpack.c.l.b16 %v182
    %v386 = vunpack.c.l.b16 %v183
    %v387 = vunpack.c.l.b16 %v184
    %v388 = vunpack.c.l.b16 %v185
    %v389 = vunpack.c.l.b16 %v186
    %v390 = vunpack.c.l.b16 %v187
    %v391 = vunpack.c.l.b16 %v188
    %v392 = vunpack.c.l.b16 %v189
    %v393 = vunpack.c.l.b16 %v190
    %v394 = vunpack.c.l.b16 %v191
    %v395 = vunpack.c.l.b16 %v192
    %v396 = vunpack.c.l.b16 %v193
    %v397 = vunpack.c.l.b16 %v194
    %v398 = vunpack.c.l.b16 %v195
    %v399 = vunpack.c.l.b16 %v196
    %v400 = vunpack.c.l.b16 %v197
    %v401 = vunpack.c.l.b16 %v198
    %v402 = vpack.c.b16 %v305, %v304
    %v403 = vpack.c.b16 %v307, %v306
    %v404 = vpack.c.b16 %v309, %v308
    %v405 = vpack.c.b16 %v311, %v310
    %v406 = vpack.c.b16 %v313, %v312
    %v407 = vpack.c.b16 %v315, %v314
    %v408 = vpack.c.b16 %v317, %v316
    %v409 = vpack.c.b16 %v319, %v318
    %v410 = vpack.c.b16 %v321, %v320
    %v411 = vpack.c.b16 %v323, %v322
    %v412 = vpack.c.b16 %v325, %v324
    %v413 = vpack.c.b16 %v327, %v326
    %v414 = vpack.c.b16 %v329, %v328
    %v415 = vpack.c.b16 %v331, %v330
    %v416 = vpack.c.b16 %v333, %v332
    %v417 = vpack.c.b16 %v335, %v334
    %v418 = vpack.c.b16 %v337, %v336
    %v419 = vpack.c.b16 %v339, %v338
    %v420 = vpack.c.b16 %v341, %v340
    %v421 = vpack.c.b16 %v343, %v342
    %v422 = vpack.c.b16 %v345, %v344
    %v423 = vpack.c.b16 %v347, %v346
    %v424 = vpack.c.b16 %v349, %v348
    %v425 = vpack.c.b16 %v351, %v350
    %v426 = vpack.c.b16 %v353, %v352
    %v427 = vpack.c.b16 %v355, %v354
    %v428 = vpack.c.b16 %v357, %v356
    %v429 = vpack.c.b16 %v359, %v358
    %v430 = vpack.c.b16 %v361, %v360
    %v431 = vpack.c.b16 %v363, %v362
    %v432 = vpack.c.b16 %v365, %v364
    %v433 = vpack.c.b16 %v367, %v366
    %v434 = vpack.c.b16 %v369, %v368
    %v435 = vpack.c.b16 %v371, %v370
    %v436 = vpack.c.b16 %v373, %v372
    %v437 = vpack.c.b16 %v375, %v374
    %v438 = vpack.c.b16 %v377, %v376
    %v439 = vpack.c.b16 %v379, %v378
    %v440 = vpack.c.b16 %v381, %v380
    %v441 = vpack.c.b16 %v383, %v382
    %v442 = vpack.c.b16 %v385, %v384
    %v443 = vpack.c.b16 %v387, %v386
    %v444 = vpack.c.b16 %v389, %v388
    %v445 = vpack.c.b16 %v391, %v390
    %v446 = vpack.c.b16 %v393, %v392
    %v447 = vpack.c.b16 %v395, %v394
    %v448 = vpack.c.b16 %v397, %v396
    %v449 = vpack.c.b16 %v399, %v398
    %v450 = vpack.c.b16 %v401, %v400
    %vm500 = vcmask 130048
    %v502 = vsel %vm500, %v100, 0
    %504 = vmatprep.subr.bf16.mxu0 0
    %505 = vmatpush1.bf16.msra.mxu0 %v402
    %506 = vmatprep.subr.bf16.mxu0 0
    %507 = vmatpush1.bf16.msra.mxu0 %v403
    %508 = vmatprep.subr.bf16.mxu0 0
    %509 = vmatpush1.bf16.msra.mxu0 %v404
    %510 = vmatprep.subr.bf16.mxu0 0
    %511 = vmatpush1.bf16.msra.mxu0 %v405
    %512 = vmatprep.subr.bf16.mxu0 0
    %513 = vmatpush1.bf16.msra.mxu0 %v406
    %514 = vmatprep.subr.bf16.mxu0 0
    %515 = vmatpush1.bf16.msra.mxu0 %v407
    %516 = vmatprep.subr.bf16.mxu0 0
    %517 = vmatpush1.bf16.msra.mxu0 %v408
    %518 = vmatprep.subr.bf16.mxu0 0
    %519 = vmatpush1.bf16.msra.mxu0 %v409
    %520 = vmatprep.subr.bf16.mxu0 0
    %521 = vmatpush1.bf16.msra.mxu0 %v410
    %522 = vmatprep.subr.bf16.mxu0 0
    %523 = vmatpush1.bf16.msra.mxu0 %v411
    %524 = vmatprep.subr.bf16.mxu0 0
    %525 = vmatpush1.bf16.msra.mxu0 %v412
    %526 = vmatprep.subr.bf16.mxu0 0
    %527 = vmatpush1.bf16.msra.mxu0 %v413
    %528 = vmatprep.subr.bf16.mxu0 0
    %529 = vmatpush1.bf16.msra.mxu0 %v414
    %530 = vmatprep.subr.bf16.mxu0 0
    %531 = vmatpush1.bf16.msra.mxu0 %v415
    %532 = vmatprep.subr.bf16.mxu0 0
    %533 = vmatpush1.bf16.msra.mxu0 %v416
    %534 = vmatprep.subr.bf16.mxu0 0
    %535 = vmatpush1.bf16.msra.mxu0 %v417
    %536 = vmatprep.mubr.bf16.mxu0 %v95
    %537 = vmatmul.mubr.bf16.gmra.mrb[0].mxu0 %v94
    %v538 = vpop.f32.mrb[0].mxu0
    %v539 = vadd.f32 %v204, %v538
    %v540 = vpop.f32.mrb[0].mxu0
    %v541 = vpop.f32.mrb[0].mxu0
    %v542 = vpop.f32.mrb[0].mxu0
    %543 = vdwg.mxu0
    %544 = vmatprep.subr.bf16.mxu0 0
    %545 = vmatpush1.bf16.msra.mxu0 %v418
    %546 = vmatprep.subr.bf16.mxu0 0
    %547 = vmatpush1.bf16.msra.mxu0 %v419
    %548 = vmatprep.subr.bf16.mxu0 0
    %549 = vmatpush1.bf16.msra.mxu0 %v420
    %550 = vmatprep.subr.bf16.mxu0 0
    %551 = vmatpush1.bf16.msra.mxu0 %v421
    %552 = vmatprep.subr.bf16.mxu0 0
    %553 = vmatpush1.bf16.msra.mxu0 %v422
    %554 = vmatprep.subr.bf16.mxu0 0
    %555 = vmatpush1.bf16.msra.mxu0 %v423
    %556 = vmatprep.subr.bf16.mxu0 0
    %557 = vmatpush1.bf16.msra.mxu0 %v424
    %558 = vmatprep.subr.bf16.mxu0 0
    %559 = vmatpush1.bf16.msra.mxu0 %v425
    %560 = vmatprep.subr.bf16.mxu0 0
    %561 = vmatpush1.bf16.msra.mxu0 %v426
    %562 = vmatprep.subr.bf16.mxu0 0
    %563 = vmatpush1.bf16.msra.mxu0 %v427
    %564 = vmatprep.subr.bf16.mxu0 0
    %565 = vmatpush1.bf16.msra.mxu0 %v428
    %566 = vmatprep.subr.bf16.mxu0 0
    %567 = vmatpush1.bf16.msra.mxu0 %v429
    %568 = vmatprep.subr.bf16.mxu0 0
    %569 = vmatpush1.bf16.msra.mxu0 %v430
    %570 = vmatprep.subr.bf16.mxu0 0
    %571 = vmatpush1.bf16.msra.mxu0 %v431
    %572 = vmatprep.subr.bf16.mxu0 0
    %573 = vmatpush1.bf16.msra.mxu0 %v432
    %574 = vmatprep.subr.bf16.mxu0 0
    %575 = vmatpush1.bf16.msra.mxu0 %v433
    %576 = vmatprep.mubr.bf16.mxu0 %v97
    %577 = vmatmul.mubr.bf16.gmra.mrb[0].mxu0 %v96
    %v578 = vpop.f32.mrb[0].mxu0
    %v579 = vadd.f32 %v539, %v578
    %v580 = vpop.f32.mrb[0].mxu0
    %v581 = vpop.f32.mrb[0].mxu0
    %v582 = vpop.f32.mrb[0].mxu0
    %583 = vdwg.mxu0
    %584 = vmatprep.subr.bf16.mxu0 0
    %585 = vmatpush1.bf16.msra.mxu0 %v434
    %586 = vmatprep.subr.bf16.mxu0 0
    %587 = vmatpush1.bf16.msra.mxu0 %v435
    %588 = vmatprep.subr.bf16.mxu0 0
    %589 = vmatpush1.bf16.msra.mxu0 %v436
    %590 = vmatprep.subr.bf16.mxu0 0
    %591 = vmatpush1.bf16.msra.mxu0 %v437
    %592 = vmatprep.subr.bf16.mxu0 0
    %593 = vmatpush1.bf16.msra.mxu0 %v438
    %594 = vmatprep.subr.bf16.mxu0 0
    %595 = vmatpush1.bf16.msra.mxu0 %v439
    %596 = vmatprep.subr.bf16.mxu0 0
    %597 = vmatpush1.bf16.msra.mxu0 %v440
    %598 = vmatprep.subr.bf16.mxu0 0
    %599 = vmatpush1.bf16.msra.mxu0 %v441
    %600 = vmatprep.subr.bf16.mxu0 0
    %601 = vmatpush1.bf16.msra.mxu0 %v442
    %602 = vmatprep.subr.bf16.mxu0 0
    %603 = vmatpush1.bf16.msra.mxu0 %v443
    %604 = vmatprep.subr.bf16.mxu0 0
    %605 = vmatpush1.bf16.msra.mxu0 %v444
    %606 = vmatprep.subr.bf16.mxu0 0
    %607 = vmatpush1.bf16.msra.mxu0 %v445
    %608 = vmatprep.subr.bf16.mxu0 0
    %609 = vmatpush1.bf16.msra.mxu0 %v446
    %610 = vmatprep.subr.bf16.mxu0 0
    %611 = vmatpush1.bf16.msra.mxu0 %v447
    %612 = vmatprep.subr.bf16.mxu0 0
    %613 = vmatpush1.bf16.msra.mxu0 %v448
    %614 = vmatprep.subr.bf16.mxu0 0
    %615 = vmatpush1.bf16.msra.mxu0 %v449
    %616 = vmatprep.mubr.bf16.mxu0 %v99
    %617 = vmatmul.mubr.bf16.gmra.mrb[0].mxu0 %v98
    %v618 = vpop.f32.mrb[0].mxu0
    %v619 = vadd.f32 %v579, %v618
    %v620 = vpop.f32.mrb[0].mxu0
    %v621 = vpop.f32.mrb[0].mxu0
    %v622 = vpop.f32.mrb[0].mxu0
    %623 = vdwg.mxu0
    %624 = vmatprep.subr.bf16.mxu0 0
    %625 = vmatpush1.bf16.msra.mxu0 %v450
    %626 = vmatprep.subr.bf16.mxu0 0
    %627 = vmatpush1.bf16.msra.mxu0 0
    %628 = vmatprep.subr.bf16.mxu0 0
    %629 = vmatpush1.bf16.msra.mxu0 0
    %630 = vmatprep.subr.bf16.mxu0 0
    %631 = vmatpush1.bf16.msra.mxu0 0
    %632 = vmatprep.subr.bf16.mxu0 0
    %633 = vmatpush1.bf16.msra.mxu0 0
    %634 = vmatprep.subr.bf16.mxu0 0
    %635 = vmatpush1.bf16.msra.mxu0 0
    %636 = vmatprep.subr.bf16.mxu0 0
    %637 = vmatpush1.bf16.msra.mxu0 0
    %638 = vmatprep.subr.bf16.mxu0 0
    %639 = vmatpush1.bf16.msra.mxu0 0
    %640 = vmatprep.subr.bf16.mxu0 0
    %641 = vmatpush1.bf16.msra.mxu0 0
    %642 = vmatprep.subr.bf16.mxu0 0
    %643 = vmatpush1.bf16.msra.mxu0 0
    %644 = vmatprep.subr.bf16.mxu0 0
    %645 = vmatpush1.bf16.msra.mxu0 0
    %646 = vmatprep.subr.bf16.mxu0 0
    %647 = vmatpush1.bf16.msra.mxu0 0
    %648 = vmatprep.subr.bf16.mxu0 0
    %649 = vmatpush1.bf16.msra.mxu0 0
    %650 = vmatprep.subr.bf16.mxu0 0
    %651 = vmatpush1.bf16.msra.mxu0 0
    %652 = vmatprep.subr.bf16.mxu0 0
    %653 = vmatpush1.bf16.msra.mxu0 0
    %654 = vmatprep.subr.bf16.mxu0 0
    %655 = vmatpush1.bf16.msra.mxu0 0
    %656 = vmatprep.mubr.bf16.mxu0 0
    %657 = vmatmul.mubr.bf16.gmra.mrb[0].mxu0 %v502
    %v658 = vpop.f32.mrb[0].mxu0
    %v659 = vadd.f32 %v619, %v658
    %v660 = vpop.f32.mrb[0].mxu0
    %v661 = vpop.f32.mrb[0].mxu0
    %v662 = vpop.f32.mrb[0].mxu0
    %663 = vdwg.mxu0
    %v664 = vmul.f32 %v659, 0.5
    %v665 = vtanh.pop %v664
    %v666 = vmul.f32 %v665, 0.5
    %v667 = vadd.f32 %v666, 0.5
    %v668 = vpack.c.bf16 %v667, %v667
    %669 = vst [vmem:[#allocation11] sm:$0xf] %v668
    %v670 = vld [vmem:[#allocation8] sm:$0xf]
    %v671 = vld [vmem:[#allocation8 + $0x4] sm:$0xf]
    %v672 = vld [vmem:[#allocation8 + $0x8] sm:$0xf]
    %v673 = vld [vmem:[#allocation8 + $0xc] sm:$0xf]
    %v674 = vld [vmem:[#allocation8 + $0x10] sm:$0xf]
    %v675 = vld [vmem:[#allocation8 + $0x14] sm:$0xf]
    %v676 = vld [vmem:[#allocation8 + $0x18] sm:$0xf]
    %v677 = vld [vmem:[#allocation8 + $0x1c] sm:$0xf]
    %v678 = vld [vmem:[#allocation8 + $0x20] sm:$0xf]
    %v679 = vld [vmem:[#allocation8 + $0x24] sm:$0xf]
    %v680 = vld [vmem:[#allocation8 + $0x28] sm:$0xf]
    %v681 = vld [vmem:[#allocation8 + $0x2c] sm:$0xf]
    %v682 = vld [vmem:[#allocation8 + $0x30] sm:$0xf]
    %v683 = vld [vmem:[#allocation8 + $0x34] sm:$0xf]
    %v684 = vld [vmem:[#allocation8 + $0x38] sm:$0xf]
    %v685 = vld [vmem:[#allocation8 + $0x3c] sm:$0xf]
    %v686 = vld [vmem:[#allocation10] sm:$0x1]
    %v688 = vlaneseq
    %v689 = vshrl.u32 %v688, 7
    %v690 = vsub.s32 0, %v689
    %v691 = vrot.slane %v686, %v690
    %v709 = vunpack.c.l.b16 %v670
    %v710 = vunpack.c.l.b16 %v671
    %v711 = vunpack.c.l.b16 %v672
    %v712 = vunpack.c.l.b16 %v673
    %v713 = vunpack.c.l.b16 %v674
    %v714 = vunpack.c.l.b16 %v675
    %v715 = vunpack.c.l.b16 %v676
    %v716 = vunpack.c.l.b16 %v677
    %v717 = vunpack.c.l.b16 %v678
    %v718 = vunpack.c.l.b16 %v679
    %v719 = vunpack.c.l.b16 %v680
    %v720 = vunpack.c.l.b16 %v681
    %v721 = vunpack.c.l.b16 %v682
    %v722 = vunpack.c.l.b16 %v683
    %v723 = vunpack.c.l.b16 %v684
    %v724 = vunpack.c.l.b16 %v685
    %v725 = vpack.c.b16 %v710, %v709
    %v726 = vpack.c.b16 %v712, %v711
    %v727 = vpack.c.b16 %v714, %v713
    %v728 = vpack.c.b16 %v716, %v715
    %v729 = vpack.c.b16 %v718, %v717
    %v730 = vpack.c.b16 %v720, %v719
    %v731 = vpack.c.b16 %v722, %v721
    %v732 = vpack.c.b16 %v724, %v723
    %741 = vmatprep.subr.bf16.mxu0 0
    %742 = vmatpush1.bf16.msra.mxu0 %v725
    %743 = vmatprep.subr.bf16.mxu0 0
    %744 = vmatpush1.bf16.msra.mxu0 %v726
    %745 = vmatprep.subr.bf16.mxu0 0
    %746 = vmatpush1.bf16.msra.mxu0 %v727
    %747 = vmatprep.subr.bf16.mxu0 0
    %748 = vmatpush1.bf16.msra.mxu0 %v728
    %749 = vmatprep.subr.bf16.mxu0 0
    %750 = vmatpush1.bf16.msra.mxu0 %v729
    %751 = vmatprep.subr.bf16.mxu0 0
    %752 = vmatpush1.bf16.msra.mxu0 %v730
    %753 = vmatprep.subr.bf16.mxu0 0
    %754 = vmatpush1.bf16.msra.mxu0 %v731
    %755 = vmatprep.subr.bf16.mxu0 0
    %756 = vmatpush1.bf16.msra.mxu0 %v732
    %757 = vmatprep.subr.bf16.mxu0 0
    %758 = vmatpush1.bf16.msra.mxu0 0
    %759 = vmatprep.subr.bf16.mxu0 0
    %760 = vmatpush1.bf16.msra.mxu0 0
    %761 = vmatprep.subr.bf16.mxu0 0
    %762 = vmatpush1.bf16.msra.mxu0 0
    %763 = vmatprep.subr.bf16.mxu0 0
    %764 = vmatpush1.bf16.msra.mxu0 0
    %765 = vmatprep.subr.bf16.mxu0 0
    %766 = vmatpush1.bf16.msra.mxu0 0
    %767 = vmatprep.subr.bf16.mxu0 0
    %768 = vmatpush1.bf16.msra.mxu0 0
    %769 = vmatprep.subr.bf16.mxu0 0
    %770 = vmatpush1.bf16.msra.mxu0 0
    %771 = vmatprep.subr.bf16.mxu0 0
    %772 = vmatpush1.bf16.msra.mxu0 0
    %773 = vmatprep.mubr.bf16.mxu0 0
    %774 = vmatmul.mubr.bf16.gmra.mrb[0].mxu0 %v668
    %v775 = vpop.f32.mrb[0].mxu0
    %v776 = vadd.f32 %v691, %v775
    %v777 = vpop.f32.mrb[0].mxu0
    %v778 = vpop.f32.mrb[0].mxu0
    %v779 = vpop.f32.mrb[0].mxu0
    %780 = vdwg.mxu0
    %v781 = vlaneseq
    %v782 = vand.u32 %v781, 127
    %vm783 = vcmp.lt.s32.totalorder %v782, 10
    %v784 = vsel %vm783, %v776, -1e+30
    %785 = vmax.xlane.f32.xlu0 %v784
    %v786 = vpop.xlane.xlu0 %785
    %v787 = vsub.f32 %v784, %v786
    %v788 = vmul.f32 %v787, 1.442695
    %v789 = vpow.pop %v788
    %790 = vadd.xlane.f32.xlu0 %v789
    %v791 = vpop.xlane.xlu0 %790
    %v792 = vrcp.pop %v791
    %v793 = vmul.f32 1.0, %v792
    %v794 = vmul.f32 %v789, %v793
    %v795 = vmul.f32 %v776, 0.5
    %v796 = vtanh.pop %v795
    %v797 = vmul.f32 %v796, 0.5
    %v798 = vadd.f32 %v797, 0.5
    %v799 = vsel %vm783, %v794, %v798
    %800 = vst [vmem:[#allocation12] sm:$0xff] %v799
    // Predicated region
    $region42: #{mnist_forward.1} parent=1 // pred_check
      _
    $region43: #{mnist_forward.1} parent=1 // pred_check_branch
      %802 = sbr.rel (0) target = $region45
    $region44: #{mnist_forward.1} parent=1 // pred_region
      %s804 = ssub.s32 64, 64
      %805 = vsyncadd [#allocation4], %s804
      %s807 = sshll.u32 [#allocation11], 4
      %s808 = int_to_ptr.vmem [resolvable:$true] %s807
      %810 = dma.vmem_to_hbm [thread:$0]  %s808, 64, %s5, [#allocation4]
    $region45: #{mnist_forward.1} parent=1 // pred_fallthru
      _
    // Predicated region
    $region46: #{mnist_forward.1} parent=1 // pred_check
      _
    $region47: #{mnist_forward.1} parent=1 // pred_check_branch
      %812 = sbr.rel (0) target = $region49
    $region48: #{mnist_forward.1} parent=1 // pred_region
      %s814 = ssub.s32 128, 128
      %815 = vsyncadd [#allocation13], %s814
      %s817 = sshll.u32 [#allocation12], 4
      %s818 = int_to_ptr.vmem [resolvable:$true] %s817
      %820 = dma.vmem_to_hbm [thread:$0]  %s818, 128, %s6, [#allocation13]
    $region49: #{mnist_forward.1} parent=1 // pred_fallthru
      _
    // Predicated region
    $region50: #{mnist_forward.1} parent=1 // pred_check
      _
    $region51: #{mnist_forward.1} parent=1 // pred_check_branch
      %822 = sbr.rel (0) target = $region53
    $region52: #{mnist_forward.1} parent=1 // pred_region
      %823 = dma.done [#allocation4], 64
    $region53: #{mnist_forward.1} parent=1 // pred_fallthru
      _
    // Predicated region
    $region54: #{mnist_forward.1} parent=1 // pred_check
      _
    $region55: #{mnist_forward.1} parent=1 // pred_check_branch
      %825 = sbr.rel (0) target = $region57
    $region56: #{mnist_forward.1} parent=1 // pred_region
      %826 = dma.done [#allocation13], 128
    $region57: #{mnist_forward.1} parent=1 // pred_fallthru
      _
    %827 = vsyncpa [#allocation3], 1
    %828 = vsyncpa [#allocation6], 1
    %829 = vsyncpa [#allocation9], 1
    %830 = vsyncpa [#allocation4], 1
    %831 = vsyncpa [#allocation13], 1

</llo_original>
